<compile_context>
chip_gen: v7x
topology: tpu7x:2x2x1
jax: 0.10.0
libtpu: 0.0.40
codegen_flags: <defaults>
</compile_context>

<pallas_src>
import functools

import jax
import jax.numpy as jnp
from jax.experimental import pallas as pl
from jax.experimental.pallas import tpu as pltpu


def _round_up(n, m):
    return ((n + m - 1) // m) * m


def smart_mattress_kernel(x_ref,
                          w1_ref, t1_ref,
                          w2_ref, t2_ref,
                          w3_ref, t3_ref,
                          w4_ref, b4_ref,
                          out_ref):
    # ----- fc1 (BN scale folded into w1) + shift + relu -----
    h = jnp.dot(x_ref[...], w1_ref[...], preferred_element_type=jnp.float32)
    h = jnp.maximum(h + t1_ref[...], 0.0)
    # dropout1: identity in eval mode

    # ----- fc2 + shift + relu -----
    h = jnp.dot(h.astype(jnp.bfloat16), w2_ref[...],
                preferred_element_type=jnp.float32)
    h = jnp.maximum(h + t2_ref[...], 0.0)
    # dropout2: identity in eval mode

    # ----- fc3 + shift + relu -----
    h = jnp.dot(h.astype(jnp.bfloat16), w3_ref[...],
                preferred_element_type=jnp.float32)
    h = jnp.maximum(h + t3_ref[...], 0.0)
    # dropout3: identity in eval mode

    # ----- fc4 (padded class columns carry a -1e30 bias -> masked out) -----
    logits = jnp.dot(h.astype(jnp.bfloat16), w4_ref[...],
                     preferred_element_type=jnp.float32) + b4_ref[...]

    # ----- class-on-sublane log_softmax -----
    # (TB,128) -> (128,TB) on the XLU, keep the first 8 sublanes
    # (6 real classes + 2 padded with -1e30 bias -> exp underflows to 0).
    lt = logits.T[:8, :]                                   # (8, TB)
    m = jnp.max(lt, axis=0, keepdims=True)                 # (1, TB)
    z = lt - m
    lse = jnp.log(jnp.sum(jnp.exp(z), axis=0, keepdims=True))
    out_ref[...] = z - lse                                 # (8, TB) lane-dense


@functools.partial(jax.jit, static_argnames=("n_classes", "tb"))
def smart_mattress_forward(x, params, *, n_classes=6, tb=512):
    """x: (B, 256) float32. Returns (B, n_classes) log-probabilities."""
    B, n_in = x.shape

    w1, t1 = params["w1"], params["t1"]
    w2, t2 = params["w2"], params["t2"]
    w3, t3 = params["w3"], params["t3"]
    w4, b4 = params["w4"], params["b4"]
    C = w4.shape[1]                       # padded class width (multiple of 128)
    U1, U2, U3 = w1.shape[1], w2.shape[1], w3.shape[1]

    # --- Batch tile selection (multiples of 128 so the transposed output
    # block stays lane-dense).  Keep the grid >= 2 steps whenever the batch
    # allows it so the "parallel" axis splits across both v7x TensorCores. ---
    n128 = _round_up(max(B, 1), 128) // 128        # batch size in 128-row chunks
    tb_chunks = max(1, tb // 128)
    chunks_per_tile = min(tb_chunks, n128)
    if n128 >= 2:
        chunks_per_tile = min(chunks_per_tile, -(-n128 // 2))
    TB = chunks_per_tile * 128
    grid_len = -(-n128 // chunks_per_tile)
    Bp = grid_len * TB

    # bf16 input: halves HBM read + x double-buffer; native MXU rate everywhere.
    x = x.astype(jnp.bfloat16)
    if Bp != B:
        x = jnp.pad(x, ((0, Bp - B), (0, 0)))

    grid = (grid_len,)
    in_specs = [
        pl.BlockSpec((TB, n_in), lambda i: (i, 0)),   # x: batch-tiled, bf16
        pl.BlockSpec(w1.shape, lambda i: (0, 0)),     # weights/shifts: resident
        pl.BlockSpec(t1.shape, lambda i: (0, 0)),
        pl.BlockSpec(w2.shape, lambda i: (0, 0)),
        pl.BlockSpec(t2.shape, lambda i: (0, 0)),
        pl.BlockSpec(w3.shape, lambda i: (0, 0)),
        pl.BlockSpec(t3.shape, lambda i: (0, 0)),
        pl.BlockSpec(w4.shape, lambda i: (0, 0)),
        pl.BlockSpec(b4.shape, lambda i: (0, 0)),
    ]
    # class-on-sublane output: (8, Bp), lane axis = batch (lane-dense stores).
    out_specs = pl.BlockSpec((8, TB), lambda i: (0, i))

    param_bytes = sum(int(a.size) * a.dtype.itemsize
                      for a in (w1, t1, w2, t2, w3, t3, w4, b4))
    cost = pl.CostEstimate(
        flops=2 * Bp * (n_in * U1 + U1 * U2 + U2 * U3 + U3 * C),
        transcendentals=Bp * 8,
        bytes_accessed=Bp * n_in * 2 + param_bytes + 8 * Bp * 4,
    )

    out = pl.pallas_call(
        smart_mattress_kernel,
        grid=grid,
        in_specs=in_specs,
        out_specs=out_specs,
        out_shape=jax.ShapeDtypeStruct((8, Bp), jnp.float32),
        compiler_params=pltpu.CompilerParams(
            dimension_semantics=("parallel",)),
        cost_estimate=cost,
    )(x, w1, t1, w2, t2, w3, t3, w4, b4)

    # (8, Bp) class-on-sublane -> (B, n_classes); tiny XLA transpose/slice.
    return out[:n_classes, :B].T


def make_params(key, units_1, units_2, units_3, n_in=256, n_out=6, eps=1e-5):
    """Deterministic synthetic parameters.

    Folds Linear bias + BatchNorm1d (eval-mode running stats) into the weight
    columns (scale, multiplied in f32, stored bf16) and a per-feature f32
    shift, pads all hidden/output widths to multiples of 128 lanes, and stores
    weights in bf16.  Padded logit columns get a -1e30 bias so log_softmax
    ignores them (b4 and the class reduce stay f32 -> no overflow in exp).
    """
    ks = jax.random.split(key, 20)
    k = iter(ks)

    def linear(kw, kb, fan_in, fan_out):
        w = jax.random.normal(kw, (fan_in, fan_out), jnp.float32) * 0.05
        b = jax.random.normal(kb, (fan_out,), jnp.float32) * 0.05
        return w, b

    def bn(kg, kb, km, kv, n):
        gamma = 1.0 + 0.1 * jax.random.normal(kg, (n,), jnp.float32)
        beta = 0.1 * jax.random.normal(kb, (n,), jnp.float32)
        mean = 0.1 * jax.random.normal(km, (n,), jnp.float32)
        var = 0.5 + jax.random.uniform(kv, (n,), jnp.float32)  # positive
        return gamma, beta, mean, var

    def fold(w, b, gamma, beta, mean, var):
        # y = gamma * (x@w + b - mean) / sqrt(var+eps) + beta
        #   = x @ (w * scale) + shift
        scale = gamma / jnp.sqrt(var + eps)
        w_f = w * scale[None, :]
        shift = (b - mean) * scale + beta
        return w_f, shift[None, :]

    def pad2d(a, rows, cols, fill=0.0):
        return jnp.pad(a, ((0, rows - a.shape[0]), (0, cols - a.shape[1])),
                       constant_values=fill)

    U1p = _round_up(units_1, 128)
    U2p = _round_up(units_2, 128)
    U3p = _round_up(units_3, 128)
    Cp = _round_up(n_out, 128)

    w1, b1 = linear(next(k), next(k), n_in, units_1)
    w1, t1 = fold(w1, b1, *bn(next(k), next(k), next(k), next(k), units_1))

    w2, b2 = linear(next(k), next(k), units_1, units_2)
    w2, t2 = fold(w2, b2, *bn(next(k), next(k), next(k), next(k), units_2))

    w3, b3 = linear(next(k), next(k), units_2, units_3)
    w3, t3 = fold(w3, b3, *bn(next(k), next(k), next(k), next(k), units_3))

    w4, b4 = linear(next(k), next(k), units_3, n_out)

    return {
        "w1": pad2d(w1, n_in, U1p).astype(jnp.bfloat16),
        "t1": pad2d(t1, 1, U1p),
        "w2": pad2d(w2, U1p, U2p).astype(jnp.bfloat16),
        "t2": pad2d(t2, 1, U2p),
        "w3": pad2d(w3, U2p, U3p).astype(jnp.bfloat16),
        "t3": pad2d(t3, 1, U3p),
        "w4": pad2d(w4, U3p, Cp).astype(jnp.bfloat16),
        "b4": pad2d(b4[None, :], 1, Cp, fill=-1e30),
    }


def reference_forward(x, p, n_classes=6):
    """Pure-JAX reference of the same eval-mode bf16-matmul/f32-accum path."""
    def dot(a, w):
        return jnp.dot(a.astype(jnp.bfloat16), w,
                       preferred_element_type=jnp.float32)

    h = jnp.maximum(dot(x, p["w1"]) + p["t1"], 0.0)
    h = jnp.maximum(dot(h, p["w2"]) + p["t2"], 0.0)
    h = jnp.maximum(dot(h, p["w3"]) + p["t3"], 0.0)
    logits = dot(h, p["w4"]) + p["b4"]
    # Slice to the real classes *before* log_softmax: checks that the -1e30
    # padding in the kernel is numerically equivalent to true masking.
    return jax.nn.log_softmax(logits[:, :n_classes], axis=1)


if __name__ == "__main__":
    key = jax.random.PRNGKey(0)
    k_x, k_p = jax.random.split(key)

    B = 200                      # not a multiple of 128: exercises batch padding
    units_1, units_2, units_3 = 128, 64, 32
    # TODO(synk): dropout layers are identity in eval mode; training-mode
    # stochastic dropout / batch-stat BatchNorm not implemented.

    x = jax.random.normal(k_x, (B, 256), jnp.float32)
    params = make_params(k_p, units_1, units_2, units_3)

    out = smart_mattress_forward(x, params)
    out = jax.block_until_ready(out)

    ref = reference_forward(x, params)
    assert out.shape == (B, 6)
    assert bool(jnp.all(jnp.isfinite(out)))
    assert jnp.allclose(out, ref, atol=1e-3, rtol=1e-3)

    print("KERNEL_OK")
</pallas_src>

<mosaic_0001>
module attributes {stable_mosaic.version = 11 : i64} {
  func.func @smart_mattress_kernel(%arg0: i32, %arg1: memref<128x256xbf16, #tpu.memory_space<vmem>>, %arg2: memref<256x128xbf16, #tpu.memory_space<vmem>>, %arg3: memref<1x128xf32, #tpu.memory_space<vmem>>, %arg4: memref<128x128xbf16, #tpu.memory_space<vmem>>, %arg5: memref<1x128xf32, #tpu.memory_space<vmem>>, %arg6: memref<128x128xbf16, #tpu.memory_space<vmem>>, %arg7: memref<1x128xf32, #tpu.memory_space<vmem>>, %arg8: memref<128x128xbf16, #tpu.memory_space<vmem>>, %arg9: memref<1x128xf32, #tpu.memory_space<vmem>>, %arg10: memref<8x128xf32, #tpu.memory_space<vmem>>) attributes {dimension_semantics = [#tpu.dimension_semantics<parallel>], iteration_bounds = array<i64: 2>, scalar_prefetch = 0 : i64, scratch_operands = 0 : i64, tpu.core_type = #tpu.core_type<tc>, window_params = [{transform_indices = @transform_0, window_bounds = array<i64: 128, 256>}, {pipeline_mode = #tpu.pipeline_mode<synchronous>, transform_indices = @transform_1, window_bounds = array<i64: 256, 128>}, {pipeline_mode = #tpu.pipeline_mode<synchronous>, transform_indices = @transform_2, window_bounds = array<i64: 1, 128>}, {pipeline_mode = #tpu.pipeline_mode<synchronous>, transform_indices = @transform_3, window_bounds = array<i64: 128, 128>}, {pipeline_mode = #tpu.pipeline_mode<synchronous>, transform_indices = @transform_4, window_bounds = array<i64: 1, 128>}, {pipeline_mode = #tpu.pipeline_mode<synchronous>, transform_indices = @transform_5, window_bounds = array<i64: 128, 128>}, {pipeline_mode = #tpu.pipeline_mode<synchronous>, transform_indices = @transform_6, window_bounds = array<i64: 1, 128>}, {pipeline_mode = #tpu.pipeline_mode<synchronous>, transform_indices = @transform_7, window_bounds = array<i64: 128, 128>}, {pipeline_mode = #tpu.pipeline_mode<synchronous>, transform_indices = @transform_8, window_bounds = array<i64: 1, 128>}, {transform_indices = @transform_9, window_bounds = array<i64: 8, 128>}]} {
    %c0 = arith.constant 0 : index
    %c0_0 = arith.constant 0 : index
    %0 = vector.load %arg1[%c0, %c0_0] : memref<128x256xbf16, #tpu.memory_space<vmem>>, vector<128x256xbf16>
    %c0_1 = arith.constant 0 : index
    %c0_2 = arith.constant 0 : index
    %1 = vector.load %arg2[%c0_1, %c0_2] : memref<256x128xbf16, #tpu.memory_space<vmem>>, vector<256x128xbf16>
    %cst = arith.constant dense<0.000000e+00> : vector<128x128xf32>
    %2 = tpu.matmul %0, %1, %cst {dimension_numbers = #tpu.dot_dimension_numbers<[1], [0], [0], [1], [0, 0, 1, 1], [], []>} : vector<128x256xbf16>, vector<256x128xbf16>, vector<128x128xf32> -> vector<128x128xf32>
    %c0_3 = arith.constant 0 : index
    %c0_4 = arith.constant 0 : index
    %3 = vector.load %arg3[%c0_3, %c0_4] : memref<1x128xf32, #tpu.memory_space<vmem>>, vector<1x128xf32>
    %4 = vector.broadcast %3 : vector<1x128xf32> to vector<128x128xf32>
    %5 = arith.addf %2, %4 : vector<128x128xf32>
    %cst_5 = arith.constant 0.000000e+00 : f32
    %6 = vector.broadcast %cst_5 : f32 to vector<128x128xf32>
    %7 = arith.maximumf %5, %6 : vector<128x128xf32>
    %8 = arith.truncf %7 : vector<128x128xf32> to vector<128x128xbf16>
    %c0_6 = arith.constant 0 : index
    %c0_7 = arith.constant 0 : index
    %9 = vector.load %arg4[%c0_6, %c0_7] : memref<128x128xbf16, #tpu.memory_space<vmem>>, vector<128x128xbf16>
    %cst_8 = arith.constant dense<0.000000e+00> : vector<128x128xf32>
    %10 = tpu.matmul %8, %9, %cst_8 {dimension_numbers = #tpu.dot_dimension_numbers<[1], [0], [0], [1], [0, 0, 1, 1], [], []>} : vector<128x128xbf16>, vector<128x128xbf16>, vector<128x128xf32> -> vector<128x128xf32>
    %c0_9 = arith.constant 0 : index
    %c0_10 = arith.constant 0 : index
    %11 = vector.load %arg5[%c0_9, %c0_10] : memref<1x128xf32, #tpu.memory_space<vmem>>, vector<1x128xf32>
    %12 = vector.broadcast %11 : vector<1x128xf32> to vector<128x128xf32>
    %13 = arith.addf %10, %12 : vector<128x128xf32>
    %cst_11 = arith.constant 0.000000e+00 : f32
    %14 = vector.broadcast %cst_11 : f32 to vector<128x128xf32>
    %15 = arith.maximumf %13, %14 : vector<128x128xf32>
    %16 = arith.truncf %15 : vector<128x128xf32> to vector<128x128xbf16>
    %c0_12 = arith.constant 0 : index
    %c0_13 = arith.constant 0 : index
    %17 = vector.load %arg6[%c0_12, %c0_13] : memref<128x128xbf16, #tpu.memory_space<vmem>>, vector<128x128xbf16>
    %cst_14 = arith.constant dense<0.000000e+00> : vector<128x128xf32>
    %18 = tpu.matmul %16, %17, %cst_14 {dimension_numbers = #tpu.dot_dimension_numbers<[1], [0], [0], [1], [0, 0, 1, 1], [], []>} : vector<128x128xbf16>, vector<128x128xbf16>, vector<128x128xf32> -> vector<128x128xf32>
    %c0_15 = arith.constant 0 : index
    %c0_16 = arith.constant 0 : index
    %19 = vector.load %arg7[%c0_15, %c0_16] : memref<1x128xf32, #tpu.memory_space<vmem>>, vector<1x128xf32>
    %20 = vector.broadcast %19 : vector<1x128xf32> to vector<128x128xf32>
    %21 = arith.addf %18, %20 : vector<128x128xf32>
    %cst_17 = arith.constant 0.000000e+00 : f32
    %22 = vector.broadcast %cst_17 : f32 to vector<128x128xf32>
    %23 = arith.maximumf %21, %22 : vector<128x128xf32>
    %24 = arith.truncf %23 : vector<128x128xf32> to vector<128x128xbf16>
    %c0_18 = arith.constant 0 : index
    %c0_19 = arith.constant 0 : index
    %25 = vector.load %arg8[%c0_18, %c0_19] : memref<128x128xbf16, #tpu.memory_space<vmem>>, vector<128x128xbf16>
    %cst_20 = arith.constant dense<0.000000e+00> : vector<128x128xf32>
    %26 = tpu.matmul %24, %25, %cst_20 {dimension_numbers = #tpu.dot_dimension_numbers<[1], [0], [0], [1], [0, 0, 1, 1], [], []>} : vector<128x128xbf16>, vector<128x128xbf16>, vector<128x128xf32> -> vector<128x128xf32>
    %c0_21 = arith.constant 0 : index
    %c0_22 = arith.constant 0 : index
    %27 = vector.load %arg9[%c0_21, %c0_22] : memref<1x128xf32, #tpu.memory_space<vmem>>, vector<1x128xf32>
    %28 = vector.broadcast %27 : vector<1x128xf32> to vector<128x128xf32>
    %29 = arith.addf %26, %28 : vector<128x128xf32>
    %30 = tpu.transpose %29, [1, 0] : vector<128x128xf32> -> vector<128x128xf32>
    %31 = vector.extract_strided_slice %30 {offsets = [0, 0], sizes = [8, 128], strides = [1, 1]} : vector<128x128xf32> to vector<8x128xf32>
    %cst_23 = arith.constant dense<0xFF800000> : vector<128xf32>
    %32 = vector.multi_reduction <maximumf>, %31, %cst_23 [0] : vector<8x128xf32> to vector<128xf32>
    %33 = vector.shape_cast %32 : vector<128xf32> to vector<1x128xf32>
    %34 = vector.broadcast %33 : vector<1x128xf32> to vector<8x128xf32>
    %35 = arith.subf %31, %34 : vector<8x128xf32>
    %36 = math.exp %35 : vector<8x128xf32>
    %cst_24 = arith.constant dense<0.000000e+00> : vector<128xf32>
    %37 = vector.multi_reduction <add>, %36, %cst_24 [0] : vector<8x128xf32> to vector<128xf32>
    %38 = vector.shape_cast %37 : vector<128xf32> to vector<1x128xf32>
    %39 = math.log %38 : vector<1x128xf32>
    %40 = vector.broadcast %39 : vector<1x128xf32> to vector<8x128xf32>
    %41 = arith.subf %35, %40 : vector<8x128xf32>
    %c0_25 = arith.constant 0 : index
    %c0_26 = arith.constant 0 : index
    %42 = vector.load %arg10[%c0_25, %c0_26] : memref<8x128xf32, #tpu.memory_space<vmem>>, vector<8x128xf32>
    tpu.vector_store %arg10[%c0_25, %c0_26], %41 {strides = array<i32>} : memref<8x128xf32, #tpu.memory_space<vmem>>, vector<8x128xf32>,
    return
  }
  func.func @transform_0(%arg0: i32) -> (i32, i32) {
    %c0_i32 = arith.constant 0 : i32
    %c0_i32_0 = arith.constant 0 : i32
    return %arg0, %c0_i32 : i32, i32
  }
  func.func @transform_1(%arg0: i32) -> (i32, i32) {
    %c0_i32 = arith.constant 0 : i32
    %c0_i32_0 = arith.constant 0 : i32
    %c0_i32_1 = arith.constant 0 : i32
    return %c0_i32, %c0_i32_0 : i32, i32
  }
  func.func @transform_2(%arg0: i32) -> (i32, i32) {
    %c0_i32 = arith.constant 0 : i32
    %c0_i32_0 = arith.constant 0 : i32
    %c0_i32_1 = arith.constant 0 : i32
    return %c0_i32, %c0_i32_0 : i32, i32
  }
  func.func @transform_3(%arg0: i32) -> (i32, i32) {
    %c0_i32 = arith.constant 0 : i32
    %c0_i32_0 = arith.constant 0 : i32
    %c0_i32_1 = arith.constant 0 : i32
    return %c0_i32, %c0_i32_0 : i32, i32
  }
  func.func @transform_4(%arg0: i32) -> (i32, i32) {
    %c0_i32 = arith.constant 0 : i32
    %c0_i32_0 = arith.constant 0 : i32
    %c0_i32_1 = arith.constant 0 : i32
    return %c0_i32, %c0_i32_0 : i32, i32
  }
  func.func @transform_5(%arg0: i32) -> (i32, i32) {
    %c0_i32 = arith.constant 0 : i32
    %c0_i32_0 = arith.constant 0 : i32
    %c0_i32_1 = arith.constant 0 : i32
    return %c0_i32, %c0_i32_0 : i32, i32
  }
  func.func @transform_6(%arg0: i32) -> (i32, i32) {
    %c0_i32 = arith.constant 0 : i32
    %c0_i32_0 = arith.constant 0 : i32
    %c0_i32_1 = arith.constant 0 : i32
    return %c0_i32, %c0_i32_0 : i32, i32
  }
  func.func @transform_7(%arg0: i32) -> (i32, i32) {
    %c0_i32 = arith.constant 0 : i32
    %c0_i32_0 = arith.constant 0 : i32
    %c0_i32_1 = arith.constant 0 : i32
    return %c0_i32, %c0_i32_0 : i32, i32
  }
  func.func @transform_8(%arg0: i32) -> (i32, i32) {
    %c0_i32 = arith.constant 0 : i32
    %c0_i32_0 = arith.constant 0 : i32
    %c0_i32_1 = arith.constant 0 : i32
    return %c0_i32, %c0_i32_0 : i32, i32
  }
  func.func @transform_9(%arg0: i32) -> (i32, i32) {
    %c0_i32 = arith.constant 0 : i32
    %c0_i32_0 = arith.constant 0 : i32
    return %c0_i32, %arg0 : i32, i32
  }
}

</mosaic_0001>

<llo_original>
// kernel: smart_mattress_forward.1
$region0: #{smart_mattress_forward.1}
  #allocation0 [shape = 'u32[]', space=smem, size = 0x4, offset = 0x4, fixed_abs, tag = 'smem constant byte address 0x4 - core index']
  #allocation1 [shape = 'u32[144,128]{1,0:T(1,128)}', space=vmem, size = 0x12000, scoped, tag = 'internal scratch']
  %s0 = inlined_call_operand.vmem [shape: bf16[256,256], index: 0, kind: input, shape index: {}]
  %s1 = inlined_call_operand.vmem [shape: bf16[256,128], index: 1, kind: input, shape index: {}]
  %s2 = inlined_call_operand.vmem [shape: f32[1,128], index: 2, kind: input, shape index: {}]
  %s3 = inlined_call_operand.vmem [shape: bf16[128,128], index: 3, kind: input, shape index: {}]
  %s4 = inlined_call_operand.vmem [shape: f32[1,128], index: 4, kind: input, shape index: {}]
  %s5 = inlined_call_operand.vmem [shape: bf16[128,128], index: 5, kind: input, shape index: {}]
  %s6 = inlined_call_operand.vmem [shape: f32[1,128], index: 6, kind: input, shape index: {}]
  %s7 = inlined_call_operand.vmem [shape: bf16[128,128], index: 7, kind: input, shape index: {}]
  %s8 = inlined_call_operand.vmem [shape: f32[1,128], index: 8, kind: input, shape index: {}]
  %s9 = inlined_call_operand.vmem [shape: f32[8,256], index: 9, kind: output, shape index: {}]
  %s10 = sld [smem:[#allocation0]]
  $region69: #{smart_mattress_forward.1} parent=0
    _
  %s12 = ssub.s32 1, %s10
  %s13 = scalar_select 0, %s12, %s10
  loop: start=0, step=1, limit=4
  $region2: #{smart_mattress_forward.1} parent=0 // loop_pre_header
    _
  $region3: #{smart_mattress_forward.1} parent=0 // loop_header
    %s15 = sphi 0, %s19
    %p16 = scmp.ge.s32.totalorder %s15, 4
    %s25 = sphi 0, %s27
    %s28 = sphi 0, %s25
    %s29 = sphi 0, %s28
    %s45 = sphi 0, %s29
    %s49 = sphi 0, %s49
    %s51 = sphi 0, %s49
    %s52 = sphi 0, %s51
    %s66 = sphi 0, %s52
    %s70 = sphi 0, %s70
    %s72 = sphi 0, %s70
    %s73 = sphi 0, %s72
    %s87 = sphi 0, %s73
    %s91 = sphi 0, %s91
    %s93 = sphi 0, %s91
    %s94 = sphi 0, %s93
    %s108 = sphi 0, %s94
    %s112 = sphi 0, %s112
    %s114 = sphi 0, %s112
    %s115 = sphi 0, %s114
    %s129 = sphi 0, %s115
    %s133 = sphi 0, %s133
    %s135 = sphi 0, %s133
    %s136 = sphi 0, %s135
    %s150 = sphi 0, %s136
    %s154 = sphi 0, %s154
    %s156 = sphi 0, %s154
    %s157 = sphi 0, %s156
    %s171 = sphi 0, %s157
    %s175 = sphi 0, %s175
    %s177 = sphi 0, %s175
    %s178 = sphi 0, %s177
    %s192 = sphi 0, %s178
    %s196 = sphi 0, %s196
    %s198 = sphi 0, %s196
    %s199 = sphi 0, %s198
    %s213 = sphi 0, %s199
    %s219 = sphi 0, %s221
    %s222 = sphi 0, %s219
    %s223 = sphi 0, %s222
    %s239 = sphi 0, %s223
  $region4: #{smart_mattress_forward.1} parent=0 // loop_header_branch
    %18 = sbr.rel (%p16) target = $region8
  $region5: #{smart_mattress_forward.1} parent=0 // loop_body
    %s20 = ssub.s32 %s15, 1
    %s21 = ssub.s32 %s15, 2
    %s22 = sadd.s32 %s15, 1
    %s23 = ssub.s32 %s15, %s22
    %p24 = scmp.eq.s32.totalorder %s23, 0
    %s26 = sadd.s32 %s25, 1
    %s27 = scalar_select %p24, %s25, %s26
    %p30 = pneg %p24
    %p31 = scmp.eq.s32.totalorder %s15, 1
    %p32 = por %p30, %p31
    %p33 = scmp.ne.s32.totalorder %s25, %s28
    %p34 = scmp.eq.s32.totalorder %s15, 0
    %p35 = por %p33, %p34
    %p36 = scmp.ne.s32.totalorder %s25, %s28
    %p37 = scmp.eq.s32.totalorder %s20, 1
    %p38 = por %p36, %p37
    %p39 = scmp.ne.s32.totalorder %s28, %s29
    %p40 = scmp.eq.s32.totalorder %s20, 0
    %p41 = por %p39, %p40
    %p42 = scmp.ne.s32.totalorder %s28, %s29
    %p43 = scmp.eq.s32.totalorder %s21, 1
    %p44 = por %p42, %p43
    %p46 = scmp.ne.s32.totalorder %s29, %s45
    %p47 = scmp.eq.s32.totalorder %s21, 0
    %p48 = por %p46, %p47
    %s50 = sadd.s32 %s49, 1
    %p53 = scmp.eq.s32.totalorder %s15, 1
    %p54 = scmp.ne.s32.totalorder %s49, %s51
    %p55 = scmp.eq.s32.totalorder %s15, 0
    %p56 = por %p54, %p55
    %p57 = scmp.ne.s32.totalorder %s49, %s51
    %p58 = scmp.eq.s32.totalorder %s20, 1
    %p59 = por %p57, %p58
    %p60 = scmp.ne.s32.totalorder %s51, %s52
    %p61 = scmp.eq.s32.totalorder %s20, 0
    %p62 = por %p60, %p61
    %p63 = scmp.ne.s32.totalorder %s51, %s52
    %p64 = scmp.eq.s32.totalorder %s21, 1
    %p65 = por %p63, %p64
    %p67 = scmp.ne.s32.totalorder %s52, %s66
    %p68 = scmp.eq.s32.totalorder %s21, 0
    %p69 = por %p67, %p68
    %s71 = sadd.s32 %s70, 1
    %p74 = scmp.eq.s32.totalorder %s15, 1
    %p75 = scmp.ne.s32.totalorder %s70, %s72
    %p76 = scmp.eq.s32.totalorder %s15, 0
    %p77 = por %p75, %p76
    %p78 = scmp.ne.s32.totalorder %s70, %s72
    %p79 = scmp.eq.s32.totalorder %s20, 1
    %p80 = por %p78, %p79
    %p81 = scmp.ne.s32.totalorder %s72, %s73
    %p82 = scmp.eq.s32.totalorder %s20, 0
    %p83 = por %p81, %p82
    %p84 = scmp.ne.s32.totalorder %s72, %s73
    %p85 = scmp.eq.s32.totalorder %s21, 1
    %p86 = por %p84, %p85
    %p88 = scmp.ne.s32.totalorder %s73, %s87
    %p89 = scmp.eq.s32.totalorder %s21, 0
    %p90 = por %p88, %p89
    %s92 = sadd.s32 %s91, 1
    %p95 = scmp.eq.s32.totalorder %s15, 1
    %p96 = scmp.ne.s32.totalorder %s91, %s93
    %p97 = scmp.eq.s32.totalorder %s15, 0
    %p98 = por %p96, %p97
    %p99 = scmp.ne.s32.totalorder %s91, %s93
    %p100 = scmp.eq.s32.totalorder %s20, 1
    %p101 = por %p99, %p100
    %p102 = scmp.ne.s32.totalorder %s93, %s94
    %p103 = scmp.eq.s32.totalorder %s20, 0
    %p104 = por %p102, %p103
    %p105 = scmp.ne.s32.totalorder %s93, %s94
    %p106 = scmp.eq.s32.totalorder %s21, 1
    %p107 = por %p105, %p106
    %p109 = scmp.ne.s32.totalorder %s94, %s108
    %p110 = scmp.eq.s32.totalorder %s21, 0
    %p111 = por %p109, %p110
    %s113 = sadd.s32 %s112, 1
    %p116 = scmp.eq.s32.totalorder %s15, 1
    %p117 = scmp.ne.s32.totalorder %s112, %s114
    %p118 = scmp.eq.s32.totalorder %s15, 0
    %p119 = por %p117, %p118
    %p120 = scmp.ne.s32.totalorder %s112, %s114
    %p121 = scmp.eq.s32.totalorder %s20, 1
    %p122 = por %p120, %p121
    %p123 = scmp.ne.s32.totalorder %s114, %s115
    %p124 = scmp.eq.s32.totalorder %s20, 0
    %p125 = por %p123, %p124
    %p126 = scmp.ne.s32.totalorder %s114, %s115
    %p127 = scmp.eq.s32.totalorder %s21, 1
    %p128 = por %p126, %p127
    %p130 = scmp.ne.s32.totalorder %s115, %s129
    %p131 = scmp.eq.s32.totalorder %s21, 0
    %p132 = por %p130, %p131
    %s134 = sadd.s32 %s133, 1
    %p137 = scmp.eq.s32.totalorder %s15, 1
    %p138 = scmp.ne.s32.totalorder %s133, %s135
    %p139 = scmp.eq.s32.totalorder %s15, 0
    %p140 = por %p138, %p139
    %p141 = scmp.ne.s32.totalorder %s133, %s135
    %p142 = scmp.eq.s32.totalorder %s20, 1
    %p143 = por %p141, %p142
    %p144 = scmp.ne.s32.totalorder %s135, %s136
    %p145 = scmp.eq.s32.totalorder %s20, 0
    %p146 = por %p144, %p145
    %p147 = scmp.ne.s32.totalorder %s135, %s136
    %p148 = scmp.eq.s32.totalorder %s21, 1
    %p149 = por %p147, %p148
    %p151 = scmp.ne.s32.totalorder %s136, %s150
    %p152 = scmp.eq.s32.totalorder %s21, 0
    %p153 = por %p151, %p152
    %s155 = sadd.s32 %s154, 1
    %p158 = scmp.eq.s32.totalorder %s15, 1
    %p159 = scmp.ne.s32.totalorder %s154, %s156
    %p160 = scmp.eq.s32.totalorder %s15, 0
    %p161 = por %p159, %p160
    %p162 = scmp.ne.s32.totalorder %s154, %s156
    %p163 = scmp.eq.s32.totalorder %s20, 1
    %p164 = por %p162, %p163
    %p165 = scmp.ne.s32.totalorder %s156, %s157
    %p166 = scmp.eq.s32.totalorder %s20, 0
    %p167 = por %p165, %p166
    %p168 = scmp.ne.s32.totalorder %s156, %s157
    %p169 = scmp.eq.s32.totalorder %s21, 1
    %p170 = por %p168, %p169
    %p172 = scmp.ne.s32.totalorder %s157, %s171
    %p173 = scmp.eq.s32.totalorder %s21, 0
    %p174 = por %p172, %p173
    %s176 = sadd.s32 %s175, 1
    %p179 = scmp.eq.s32.totalorder %s15, 1
    %p180 = scmp.ne.s32.totalorder %s175, %s177
    %p181 = scmp.eq.s32.totalorder %s15, 0
    %p182 = por %p180, %p181
    %p183 = scmp.ne.s32.totalorder %s175, %s177
    %p184 = scmp.eq.s32.totalorder %s20, 1
    %p185 = por %p183, %p184
    %p186 = scmp.ne.s32.totalorder %s177, %s178
    %p187 = scmp.eq.s32.totalorder %s20, 0
    %p188 = por %p186, %p187
    %p189 = scmp.ne.s32.totalorder %s177, %s178
    %p190 = scmp.eq.s32.totalorder %s21, 1
    %p191 = por %p189, %p190
    %p193 = scmp.ne.s32.totalorder %s178, %s192
    %p194 = scmp.eq.s32.totalorder %s21, 0
    %p195 = por %p193, %p194
    %s197 = sadd.s32 %s196, 1
    %p200 = scmp.eq.s32.totalorder %s15, 1
    %p201 = scmp.ne.s32.totalorder %s196, %s198
    %p202 = scmp.eq.s32.totalorder %s15, 0
    %p203 = por %p201, %p202
    %p204 = scmp.ne.s32.totalorder %s196, %s198
    %p205 = scmp.eq.s32.totalorder %s20, 1
    %p206 = por %p204, %p205
    %p207 = scmp.ne.s32.totalorder %s198, %s199
    %p208 = scmp.eq.s32.totalorder %s20, 0
    %p209 = por %p207, %p208
    %p210 = scmp.ne.s32.totalorder %s198, %s199
    %p211 = scmp.eq.s32.totalorder %s21, 1
    %p212 = por %p210, %p211
    %p214 = scmp.ne.s32.totalorder %s199, %s213
    %p215 = scmp.eq.s32.totalorder %s21, 0
    %p216 = por %p214, %p215
    %s217 = ssub.s32 %s15, %s22
    %p218 = scmp.eq.s32.totalorder %s217, 0
    %s220 = sadd.s32 %s219, 1
    %s221 = scalar_select %p218, %s219, %s220
    %p224 = pneg %p218
    %p225 = scmp.eq.s32.totalorder %s15, 1
    %p226 = por %p224, %p225
    %p227 = scmp.ne.s32.totalorder %s219, %s222
    %p228 = scmp.eq.s32.totalorder %s15, 0
    %p229 = por %p227, %p228
    %p230 = scmp.ne.s32.totalorder %s219, %s222
    %p231 = scmp.eq.s32.totalorder %s20, 1
    %p232 = por %p230, %p231
    %p233 = scmp.ne.s32.totalorder %s222, %s223
    %p234 = scmp.eq.s32.totalorder %s20, 0
    %p235 = por %p233, %p234
    %p236 = scmp.ne.s32.totalorder %s222, %s223
    %p237 = scmp.eq.s32.totalorder %s21, 1
    %p238 = por %p236, %p237
    %p240 = scmp.ne.s32.totalorder %s223, %s239
    %p241 = scmp.eq.s32.totalorder %s21, 0
    %p242 = por %p240, %p241
    %p243 = scmp.le.s32.totalorder 1, %s15
    %p244 = scmp.lt.s32.totalorder %s15, 3
    %p245 = pnand %p243, %p244
    %p246 = pneg %p245
    // Predicated region
    $region9: #{smart_mattress_forward.1} parent=5 // pred_check
      _
    $region10: #{smart_mattress_forward.1} parent=5 // pred_check_branch
      %248 = sbr.rel (%p245) target = $region12
    $region11: #{smart_mattress_forward.1} parent=5 // pred_region
      %s249 = ssub.s32 %s15, 1
      // Predicated region
      $region13: #{smart_mattress_forward.1} parent=11 // pred_check
        %p250 = pneg %p62
      $region14: #{smart_mattress_forward.1} parent=11 // pred_check_branch
        %252 = sbr.rel (%p250) target = $region16
      $region15: #{smart_mattress_forward.1} parent=11 // pred_region
        _
      $region16: #{smart_mattress_forward.1} parent=11 // pred_fallthru
        _
      // Predicated region
      $region17: #{smart_mattress_forward.1} parent=11 // pred_check
        %p253 = pneg %p83
      $region18: #{smart_mattress_forward.1} parent=11 // pred_check_branch
        %255 = sbr.rel (%p253) target = $region20
      $region19: #{smart_mattress_forward.1} parent=11 // pred_region
        _
      $region20: #{smart_mattress_forward.1} parent=11 // pred_fallthru
        _
      // Predicated region
      $region21: #{smart_mattress_forward.1} parent=11 // pred_check
        %p256 = pneg %p104
      $region22: #{smart_mattress_forward.1} parent=11 // pred_check_branch
        %258 = sbr.rel (%p256) target = $region24
      $region23: #{smart_mattress_forward.1} parent=11 // pred_region
        _
      $region24: #{smart_mattress_forward.1} parent=11 // pred_fallthru
        _
      // Predicated region
      $region25: #{smart_mattress_forward.1} parent=11 // pred_check
        %p259 = pneg %p125
      $region26: #{smart_mattress_forward.1} parent=11 // pred_check_branch
        %261 = sbr.rel (%p259) target = $region28
      $region27: #{smart_mattress_forward.1} parent=11 // pred_region
        _
      $region28: #{smart_mattress_forward.1} parent=11 // pred_fallthru
        _
      // Predicated region
      $region29: #{smart_mattress_forward.1} parent=11 // pred_check
        %p262 = pneg %p146
      $region30: #{smart_mattress_forward.1} parent=11 // pred_check_branch
        %264 = sbr.rel (%p262) target = $region32
      $region31: #{smart_mattress_forward.1} parent=11 // pred_region
        _
      $region32: #{smart_mattress_forward.1} parent=11 // pred_fallthru
        _
      // Predicated region
      $region33: #{smart_mattress_forward.1} parent=11 // pred_check
        %p265 = pneg %p167
      $region34: #{smart_mattress_forward.1} parent=11 // pred_check_branch
        %267 = sbr.rel (%p265) target = $region36
      $region35: #{smart_mattress_forward.1} parent=11 // pred_region
        _
      $region36: #{smart_mattress_forward.1} parent=11 // pred_fallthru
        _
      // Predicated region
      $region37: #{smart_mattress_forward.1} parent=11 // pred_check
        %p268 = pneg %p188
      $region38: #{smart_mattress_forward.1} parent=11 // pred_check_branch
        %270 = sbr.rel (%p268) target = $region40
      $region39: #{smart_mattress_forward.1} parent=11 // pred_region
        _
      $region40: #{smart_mattress_forward.1} parent=11 // pred_fallthru
        _
      // Predicated region
      $region41: #{smart_mattress_forward.1} parent=11 // pred_check
        %p271 = pneg %p209
      $region42: #{smart_mattress_forward.1} parent=11 // pred_check_branch
        %273 = sbr.rel (%p271) target = $region44
      $region43: #{smart_mattress_forward.1} parent=11 // pred_region
        _
      $region44: #{smart_mattress_forward.1} parent=11 // pred_fallthru
        _
    $region12: #{smart_mattress_forward.1} parent=5 // pred_fallthru
      _
    %p274 = scmp.lt.s32.totalorder %s15, 2
    // Predicated region
    $region45: #{smart_mattress_forward.1} parent=5 // pred_check
      %p275 = pneg %p274
    $region46: #{smart_mattress_forward.1} parent=5 // pred_check_branch
      %277 = sbr.rel (%p275) target = $region48
    $region47: #{smart_mattress_forward.1} parent=5 // pred_region
      // Predicated region
      $region49: #{smart_mattress_forward.1} parent=47 // pred_check
        %p278 = pneg %p35
      $region50: #{smart_mattress_forward.1} parent=47 // pred_check_branch
        %280 = sbr.rel (%p278) target = $region52
      $region51: #{smart_mattress_forward.1} parent=47 // pred_region
        %s281 = smul.u32 16, %s15
        %p282 = scmp.lt.s32.totalorder %s281, 31
        %s283 = scalar_select %p282, %s281, 31
        %s284 = smul.addr %s283, 2
        %s285 = smul.addr %s284, 4
        %s286 = scalar_lea.vmem %s0, %s285
        %s287 = smul.u32 16, %s15
      $region52: #{smart_mattress_forward.1} parent=47 // pred_fallthru
        _
    $region48: #{smart_mattress_forward.1} parent=5 // pred_fallthru
      _
    %p288 = scmp.le.s32.totalorder 1, %s15
    %p289 = scmp.lt.s32.totalorder %s15, 3
    %p290 = pnand %p288, %p289
    %p291 = pneg %p290
    // Predicated region
    $region53: #{smart_mattress_forward.1} parent=5 // pred_check
      _
    $region54: #{smart_mattress_forward.1} parent=5 // pred_check_branch
      %293 = sbr.rel (%p290) target = $region56
    $region55: #{smart_mattress_forward.1} parent=5 // pred_region
      %s294 = ssub.s32 %s15, 1
      %s295 = smul.u32 16, %s20
      %p296 = scmp.lt.s32.totalorder %s295, 31
      %s297 = scalar_select %p296, %s295, 31
      %s298 = smul.addr %s297, 2
      %s299 = smul.addr %s298, 4
      %s300 = scalar_lea.vmem %s0, %s299
      %p301 = pneg %p41
      %p302 = pneg %p38
      %p303 = pneg %p62
      %p304 = pneg %p59
      %p305 = pneg %p83
      %p306 = pneg %p80
      %p307 = pneg %p104
      %p308 = pneg %p101
      %p309 = pneg %p125
      %p310 = pneg %p122
      %p311 = pneg %p146
      %p312 = pneg %p143
      %p313 = pneg %p167
      %p314 = pneg %p164
      %p315 = pneg %p188
      %p316 = pneg %p185
      %p317 = pneg %p209
      %p318 = pneg %p206
      %p319 = pneg %p235
      %p320 = pneg %p232
      %p321 = scmp.lt.s32.totalorder %s20, 1
      %s322 = scalar_select %p321, %s20, 1
      %s323 = smul.addr %s322, 8
      %s324 = scalar_lea.vmem %s9, %s323
      %s325 = smul.u32 16, %s20
      %p326 = scmp.lt.s32.totalorder %s325, 31
      %s327 = scalar_select %p326, %s325, 31
      %s328 = smul.addr %s327, 2
      %s329 = smul.addr %s328, 4
      %s330 = scalar_lea.vmem %s0, %s329
      %s331 = smul.u32 16, %s20
      %p332 = scmp.lt.s32.totalorder %s20, 1
      %s333 = scalar_select %p332, %s20, 1
      %s334 = smul.addr %s333, 8
      %s335 = scalar_lea.vmem %s9, %s334
      %v337 = vld [vmem:[%s330] sm:$0xff]
      %v338 = vld [vmem:[%s330 + $0x8] sm:$0xff]
      %v339 = vld [vmem:[%s330 + $0x10] sm:$0xff]
      %v340 = vld [vmem:[%s330 + $0x18] sm:$0xff]
      %v341 = vld [vmem:[%s330 + $0x20] sm:$0xff]
      %v342 = vld [vmem:[%s330 + $0x28] sm:$0xff]
      %v343 = vld [vmem:[%s330 + $0x30] sm:$0xff]
      %v344 = vld [vmem:[%s330 + $0x38] sm:$0xff]
      %v345 = vld [vmem:[%s330 + $0x40] sm:$0xff]
      %v346 = vld [vmem:[%s330 + $0x48] sm:$0xff]
      %v347 = vld [vmem:[%s330 + $0x50] sm:$0xff]
      %v348 = vld [vmem:[%s330 + $0x58] sm:$0xff]
      %v349 = vld [vmem:[%s330 + $0x60] sm:$0xff]
      %v350 = vld [vmem:[%s330 + $0x68] sm:$0xff]
      %v351 = vld [vmem:[%s330 + $0x70] sm:$0xff]
      %v352 = vld [vmem:[%s330 + $0x78] sm:$0xff]
      %v353 = vld [vmem:[%s1] sm:$0xf]
      %v354 = vld [vmem:[%s1 + $0x4] sm:$0xf]
      %v355 = vld [vmem:[%s1 + $0x8] sm:$0xf]
      %v356 = vld [vmem:[%s1 + $0xc] sm:$0xf]
      %v357 = vld [vmem:[%s1 + $0x10] sm:$0xf]
      %v358 = vld [vmem:[%s1 + $0x14] sm:$0xf]
      %v359 = vld [vmem:[%s1 + $0x18] sm:$0xf]
      %v360 = vld [vmem:[%s1 + $0x1c] sm:$0xf]
      %v361 = vld [vmem:[%s1 + $0x20] sm:$0xf]
      %v362 = vld [vmem:[%s1 + $0x24] sm:$0xf]
      %v363 = vld [vmem:[%s1 + $0x28] sm:$0xf]
      %v364 = vld [vmem:[%s1 + $0x2c] sm:$0xf]
      %v365 = vld [vmem:[%s1 + $0x30] sm:$0xf]
      %v366 = vld [vmem:[%s1 + $0x34] sm:$0xf]
      %v367 = vld [vmem:[%s1 + $0x38] sm:$0xf]
      %v368 = vld [vmem:[%s1 + $0x3c] sm:$0xf]
      %v369 = vld [vmem:[%s1 + $0x40] sm:$0xf]
      %v370 = vld [vmem:[%s1 + $0x44] sm:$0xf]
      %v371 = vld [vmem:[%s1 + $0x48] sm:$0xf]
      %v372 = vld [vmem:[%s1 + $0x4c] sm:$0xf]
      %v373 = vld [vmem:[%s1 + $0x50] sm:$0xf]
      %v374 = vld [vmem:[%s1 + $0x54] sm:$0xf]
      %v375 = vld [vmem:[%s1 + $0x58] sm:$0xf]
      %v376 = vld [vmem:[%s1 + $0x5c] sm:$0xf]
      %v377 = vld [vmem:[%s1 + $0x60] sm:$0xf]
      %v378 = vld [vmem:[%s1 + $0x64] sm:$0xf]
      %v379 = vld [vmem:[%s1 + $0x68] sm:$0xf]
      %v380 = vld [vmem:[%s1 + $0x6c] sm:$0xf]
      %v381 = vld [vmem:[%s1 + $0x70] sm:$0xf]
      %v382 = vld [vmem:[%s1 + $0x74] sm:$0xf]
      %v383 = vld [vmem:[%s1 + $0x78] sm:$0xf]
      %v384 = vld [vmem:[%s1 + $0x7c] sm:$0xf]
      %v385 = vld [vmem:[%s2] sm:$0x1]
      %v387 = vlaneseq
      %v388 = vshrl.u32 %v387, 7
      %v389 = vsub.s32 0, %v388
      %v390 = vrot.slane %v385, %v389
      %v408 = vunpack.c.l.b16 %v337
      %v409 = vunpack.c.h.b16 %v337
      %v410 = vunpack.c.l.b16 %v338
      %v411 = vunpack.c.h.b16 %v338
      %v412 = vunpack.c.l.b16 %v339
      %v413 = vunpack.c.h.b16 %v339
      %v414 = vunpack.c.l.b16 %v340
      %v415 = vunpack.c.h.b16 %v340
      %v416 = vunpack.c.l.b16 %v341
      %v417 = vunpack.c.h.b16 %v341
      %v418 = vunpack.c.l.b16 %v342
      %v419 = vunpack.c.h.b16 %v342
      %v420 = vunpack.c.l.b16 %v343
      %v421 = vunpack.c.h.b16 %v343
      %v422 = vunpack.c.l.b16 %v344
      %v423 = vunpack.c.h.b16 %v344
      %v424 = vunpack.c.l.b16 %v345
      %v425 = vunpack.c.h.b16 %v345
      %v426 = vunpack.c.l.b16 %v346
      %v427 = vunpack.c.h.b16 %v346
      %v428 = vunpack.c.l.b16 %v347
      %v429 = vunpack.c.h.b16 %v347
      %v430 = vunpack.c.l.b16 %v348
      %v431 = vunpack.c.h.b16 %v348
      %v432 = vunpack.c.l.b16 %v349
      %v433 = vunpack.c.h.b16 %v349
      %v434 = vunpack.c.l.b16 %v350
      %v435 = vunpack.c.h.b16 %v350
      %v436 = vunpack.c.l.b16 %v351
      %v437 = vunpack.c.h.b16 %v351
      %v438 = vunpack.c.l.b16 %v352
      %v439 = vunpack.c.h.b16 %v352
      %v440 = vpack.c.b16 %v410, %v408
      %v441 = vpack.c.b16 %v411, %v409
      %v442 = vpack.c.b16 %v414, %v412
      %v443 = vpack.c.b16 %v415, %v413
      %v444 = vpack.c.b16 %v418, %v416
      %v445 = vpack.c.b16 %v419, %v417
      %v446 = vpack.c.b16 %v422, %v420
      %v447 = vpack.c.b16 %v423, %v421
      %v448 = vpack.c.b16 %v426, %v424
      %v449 = vpack.c.b16 %v427, %v425
      %v450 = vpack.c.b16 %v430, %v428
      %v451 = vpack.c.b16 %v431, %v429
      %v452 = vpack.c.b16 %v434, %v432
      %v453 = vpack.c.b16 %v435, %v433
      %v454 = vpack.c.b16 %v438, %v436
      %v455 = vpack.c.b16 %v439, %v437
      %v504 = vunpack.c.l.b16 %v353
      %v505 = vunpack.c.l.b16 %v354
      %v506 = vunpack.c.l.b16 %v355
      %v507 = vunpack.c.l.b16 %v356
      %v508 = vunpack.c.l.b16 %v357
      %v509 = vunpack.c.l.b16 %v358
      %v510 = vunpack.c.l.b16 %v359
      %v511 = vunpack.c.l.b16 %v360
      %v512 = vunpack.c.l.b16 %v361
      %v513 = vunpack.c.l.b16 %v362
      %v514 = vunpack.c.l.b16 %v363
      %v515 = vunpack.c.l.b16 %v364
      %v516 = vunpack.c.l.b16 %v365
      %v517 = vunpack.c.l.b16 %v366
      %v518 = vunpack.c.l.b16 %v367
      %v519 = vunpack.c.l.b16 %v368
      %v520 = vunpack.c.l.b16 %v369
      %v521 = vunpack.c.l.b16 %v370
      %v522 = vunpack.c.l.b16 %v371
      %v523 = vunpack.c.l.b16 %v372
      %v524 = vunpack.c.l.b16 %v373
      %v525 = vunpack.c.l.b16 %v374
      %v526 = vunpack.c.l.b16 %v375
      %v527 = vunpack.c.l.b16 %v376
      %v528 = vunpack.c.l.b16 %v377
      %v529 = vunpack.c.l.b16 %v378
      %v530 = vunpack.c.l.b16 %v379
      %v531 = vunpack.c.l.b16 %v380
      %v532 = vunpack.c.l.b16 %v381
      %v533 = vunpack.c.l.b16 %v382
      %v534 = vunpack.c.l.b16 %v383
      %v535 = vunpack.c.l.b16 %v384
      %v536 = vpack.c.b16 %v505, %v504
      %v537 = vpack.c.b16 %v507, %v506
      %v538 = vpack.c.b16 %v509, %v508
      %v539 = vpack.c.b16 %v511, %v510
      %v540 = vpack.c.b16 %v513, %v512
      %v541 = vpack.c.b16 %v515, %v514
      %v542 = vpack.c.b16 %v517, %v516
      %v543 = vpack.c.b16 %v519, %v518
      %v544 = vpack.c.b16 %v521, %v520
      %v545 = vpack.c.b16 %v523, %v522
      %v546 = vpack.c.b16 %v525, %v524
      %v547 = vpack.c.b16 %v527, %v526
      %v548 = vpack.c.b16 %v529, %v528
      %v549 = vpack.c.b16 %v531, %v530
      %v550 = vpack.c.b16 %v533, %v532
      %v551 = vpack.c.b16 %v535, %v534
      %568 = vmatprep.subr.bf16.mxu0 0
      %569 = vmatpush1.bf16.msra.mxu0 %v536
      %570 = vmatprep.subr.bf16.mxu0 0
      %571 = vmatpush1.bf16.msra.mxu0 %v537
      %572 = vmatprep.subr.bf16.mxu0 0
      %573 = vmatpush1.bf16.msra.mxu0 %v538
      %574 = vmatprep.subr.bf16.mxu0 0
      %575 = vmatpush1.bf16.msra.mxu0 %v539
      %576 = vmatprep.subr.bf16.mxu0 0
      %577 = vmatpush1.bf16.msra.mxu0 %v540
      %578 = vmatprep.subr.bf16.mxu0 0
      %579 = vmatpush1.bf16.msra.mxu0 %v541
      %580 = vmatprep.subr.bf16.mxu0 0
      %581 = vmatpush1.bf16.msra.mxu0 %v542
      %582 = vmatprep.subr.bf16.mxu0 0
      %583 = vmatpush1.bf16.msra.mxu0 %v543
      %584 = vmatprep.subr.bf16.mxu0 0
      %585 = vmatpush1.bf16.msra.mxu0 %v544
      %586 = vmatprep.subr.bf16.mxu0 0
      %587 = vmatpush1.bf16.msra.mxu0 %v545
      %588 = vmatprep.subr.bf16.mxu0 0
      %589 = vmatpush1.bf16.msra.mxu0 %v546
      %590 = vmatprep.subr.bf16.mxu0 0
      %591 = vmatpush1.bf16.msra.mxu0 %v547
      %592 = vmatprep.subr.bf16.mxu0 0
      %593 = vmatpush1.bf16.msra.mxu0 %v548
      %594 = vmatprep.subr.bf16.mxu0 0
      %595 = vmatpush1.bf16.msra.mxu0 %v549
      %596 = vmatprep.subr.bf16.mxu0 0
      %597 = vmatpush1.bf16.msra.mxu0 %v550
      %598 = vmatprep.subr.bf16.mxu0 0
      %599 = vmatpush1.bf16.msra.mxu0 %v551
      %600 = vmatprep.mubr.bf16.mxu0 %v441
      %601 = vmatmul.mubr.bf16.gmra.mrb[0].mxu0 %v440
      %v602 = vpop.f32.mrb[0].mxu0
      %v603 = vadd.f32 %v390, %v602
      %v604 = vpop.f32.mrb[0].mxu0
      %v605 = vpop.f32.mrb[0].mxu0
      %v606 = vadd.f32 %v390, %v605
      %v607 = vpop.f32.mrb[0].mxu0
      %608 = vmatprep.mubr.bf16.mxu0 %v443
      %609 = vmatmul.mubr.bf16.gmra.mrb[0].mxu0 %v442
      %v610 = vpop.f32.mrb[0].mxu0
      %v611 = vadd.f32 %v390, %v610
      %v612 = vpop.f32.mrb[0].mxu0
      %v613 = vpop.f32.mrb[0].mxu0
      %v614 = vadd.f32 %v390, %v613
      %v615 = vpop.f32.mrb[0].mxu0
      %616 = vmatprep.mubr.bf16.mxu0 %v445
      %617 = vmatmul.mubr.bf16.gmra.mrb[0].mxu0 %v444
      %v618 = vpop.f32.mrb[0].mxu0
      %v619 = vadd.f32 %v390, %v618
      %v620 = vpop.f32.mrb[0].mxu0
      %v621 = vpop.f32.mrb[0].mxu0
      %v622 = vadd.f32 %v390, %v621
      %v623 = vpop.f32.mrb[0].mxu0
      %624 = vmatprep.mubr.bf16.mxu0 %v447
      %625 = vmatmul.mubr.bf16.gmra.mrb[0].mxu0 %v446
      %v626 = vpop.f32.mrb[0].mxu0
      %v627 = vadd.f32 %v390, %v626
      %v628 = vpop.f32.mrb[0].mxu0
      %v629 = vpop.f32.mrb[0].mxu0
      %v630 = vadd.f32 %v390, %v629
      %v631 = vpop.f32.mrb[0].mxu0
      %632 = vmatprep.mubr.bf16.mxu0 %v449
      %633 = vmatmul.mubr.bf16.gmra.mrb[0].mxu0 %v448
      %v634 = vpop.f32.mrb[0].mxu0
      %v635 = vadd.f32 %v390, %v634
      %v636 = vpop.f32.mrb[0].mxu0
      %v637 = vpop.f32.mrb[0].mxu0
      %v638 = vadd.f32 %v390, %v637
      %v639 = vpop.f32.mrb[0].mxu0
      %640 = vmatprep.mubr.bf16.mxu0 %v451
      %641 = vmatmul.mubr.bf16.gmra.mrb[0].mxu0 %v450
      %v642 = vpop.f32.mrb[0].mxu0
      %v643 = vadd.f32 %v390, %v642
      %v644 = vpop.f32.mrb[0].mxu0
      %v645 = vpop.f32.mrb[0].mxu0
      %v646 = vadd.f32 %v390, %v645
      %v647 = vpop.f32.mrb[0].mxu0
      %648 = vmatprep.mubr.bf16.mxu0 %v453
      %649 = vmatmul.mubr.bf16.gmra.mrb[0].mxu0 %v452
      %v650 = vpop.f32.mrb[0].mxu0
      %v651 = vadd.f32 %v390, %v650
      %v652 = vpop.f32.mrb[0].mxu0
      %v653 = vpop.f32.mrb[0].mxu0
      %v654 = vadd.f32 %v390, %v653
      %v655 = vpop.f32.mrb[0].mxu0
      %656 = vmatprep.mubr.bf16.mxu0 %v455
      %657 = vmatmul.mubr.bf16.gmra.mrb[0].mxu0 %v454
      %v658 = vpop.f32.mrb[0].mxu0
      %v659 = vadd.f32 %v390, %v658
      %v660 = vpop.f32.mrb[0].mxu0
      %v661 = vpop.f32.mrb[0].mxu0
      %v662 = vadd.f32 %v390, %v661
      %v663 = vpop.f32.mrb[0].mxu0
      %664 = vdwg.mxu0
      %v665 = vmax.f32 %v603, 0.0
      %v666 = vmax.f32 %v606, 0.0
      %v667 = vmax.f32 %v611, 0.0
      %v668 = vmax.f32 %v614, 0.0
      %v669 = vmax.f32 %v619, 0.0
      %v670 = vmax.f32 %v622, 0.0
      %v671 = vmax.f32 %v627, 0.0
      %v672 = vmax.f32 %v630, 0.0
      %v673 = vmax.f32 %v635, 0.0
      %v674 = vmax.f32 %v638, 0.0
      %v675 = vmax.f32 %v643, 0.0
      %v676 = vmax.f32 %v646, 0.0
      %v677 = vmax.f32 %v651, 0.0
      %v678 = vmax.f32 %v654, 0.0
      %v679 = vmax.f32 %v659, 0.0
      %v680 = vmax.f32 %v662, 0.0
      %v681 = vpack.c.bf16 %v666, %v665
      %v682 = vpack.c.bf16 %v668, %v667
      %v683 = vpack.c.bf16 %v670, %v669
      %v684 = vpack.c.bf16 %v672, %v671
      %v685 = vpack.c.bf16 %v674, %v673
      %v686 = vpack.c.bf16 %v676, %v675
      %v687 = vpack.c.bf16 %v678, %v677
      %v688 = vpack.c.bf16 %v680, %v679
      %v689 = vld [vmem:[%s3] sm:$0xf]
      %v690 = vld [vmem:[%s3 + $0x4] sm:$0xf]
      %v691 = vld [vmem:[%s3 + $0x8] sm:$0xf]
      %v692 = vld [vmem:[%s3 + $0xc] sm:$0xf]
      %v693 = vld [vmem:[%s3 + $0x10] sm:$0xf]
      %v694 = vld [vmem:[%s3 + $0x14] sm:$0xf]
      %v695 = vld [vmem:[%s3 + $0x18] sm:$0xf]
      %v696 = vld [vmem:[%s3 + $0x1c] sm:$0xf]
      %v697 = vld [vmem:[%s3 + $0x20] sm:$0xf]
      %v698 = vld [vmem:[%s3 + $0x24] sm:$0xf]
      %v699 = vld [vmem:[%s3 + $0x28] sm:$0xf]
      %v700 = vld [vmem:[%s3 + $0x2c] sm:$0xf]
      %v701 = vld [vmem:[%s3 + $0x30] sm:$0xf]
      %v702 = vld [vmem:[%s3 + $0x34] sm:$0xf]
      %v703 = vld [vmem:[%s3 + $0x38] sm:$0xf]
      %v704 = vld [vmem:[%s3 + $0x3c] sm:$0xf]
      %v705 = vld [vmem:[%s4] sm:$0x1]
      %v707 = vlaneseq
      %v708 = vshrl.u32 %v707, 7
      %v709 = vsub.s32 0, %v708
      %v710 = vrot.slane %v705, %v709
      %v728 = vunpack.c.l.b16 %v689
      %v729 = vunpack.c.l.b16 %v690
      %v730 = vunpack.c.l.b16 %v691
      %v731 = vunpack.c.l.b16 %v692
      %v732 = vunpack.c.l.b16 %v693
      %v733 = vunpack.c.l.b16 %v694
      %v734 = vunpack.c.l.b16 %v695
      %v735 = vunpack.c.l.b16 %v696
      %v736 = vunpack.c.l.b16 %v697
      %v737 = vunpack.c.l.b16 %v698
      %v738 = vunpack.c.l.b16 %v699
      %v739 = vunpack.c.l.b16 %v700
      %v740 = vunpack.c.l.b16 %v701
      %v741 = vunpack.c.l.b16 %v702
      %v742 = vunpack.c.l.b16 %v703
      %v743 = vunpack.c.l.b16 %v704
      %v744 = vpack.c.b16 %v729, %v728
      %v745 = vpack.c.b16 %v731, %v730
      %v746 = vpack.c.b16 %v733, %v732
      %v747 = vpack.c.b16 %v735, %v734
      %v748 = vpack.c.b16 %v737, %v736
      %v749 = vpack.c.b16 %v739, %v738
      %v750 = vpack.c.b16 %v741, %v740
      %v751 = vpack.c.b16 %v743, %v742
      %760 = vmatprep.subr.bf16.mxu0 0
      %761 = vmatpush1.bf16.msra.mxu0 %v744
      %762 = vmatprep.subr.bf16.mxu0 0
      %763 = vmatpush1.bf16.msra.mxu0 %v745
      %764 = vmatprep.subr.bf16.mxu0 0
      %765 = vmatpush1.bf16.msra.mxu0 %v746
      %766 = vmatprep.subr.bf16.mxu0 0
      %767 = vmatpush1.bf16.msra.mxu0 %v747
      %768 = vmatprep.subr.bf16.mxu0 0
      %769 = vmatpush1.bf16.msra.mxu0 %v748
      %770 = vmatprep.subr.bf16.mxu0 0
      %771 = vmatpush1.bf16.msra.mxu0 %v749
      %772 = vmatprep.subr.bf16.mxu0 0
      %773 = vmatpush1.bf16.msra.mxu0 %v750
      %774 = vmatprep.subr.bf16.mxu0 0
      %775 = vmatpush1.bf16.msra.mxu0 %v751
      %776 = vmatprep.subr.bf16.mxu0 0
      %777 = vmatpush1.bf16.msra.mxu0 0
      %778 = vmatprep.subr.bf16.mxu0 0
      %779 = vmatpush1.bf16.msra.mxu0 0
      %780 = vmatprep.subr.bf16.mxu0 0
      %781 = vmatpush1.bf16.msra.mxu0 0
      %782 = vmatprep.subr.bf16.mxu0 0
      %783 = vmatpush1.bf16.msra.mxu0 0
      %784 = vmatprep.subr.bf16.mxu0 0
      %785 = vmatpush1.bf16.msra.mxu0 0
      %786 = vmatprep.subr.bf16.mxu0 0
      %787 = vmatpush1.bf16.msra.mxu0 0
      %788 = vmatprep.subr.bf16.mxu0 0
      %789 = vmatpush1.bf16.msra.mxu0 0
      %790 = vmatprep.subr.bf16.mxu0 0
      %791 = vmatpush1.bf16.msra.mxu0 0
      %792 = vmatprep.mubr.bf16.mxu0 0
      %793 = vmatmul.mubr.bf16.gmra.mrb[0].mxu0 %v681
      %v794 = vpop.f32.mrb[0].mxu0
      %v795 = vadd.f32 %v710, %v794
      %v796 = vpop.f32.mrb[0].mxu0
      %v797 = vpop.f32.mrb[0].mxu0
      %v798 = vadd.f32 %v710, %v797
      %v799 = vpop.f32.mrb[0].mxu0
      %800 = vmatprep.mubr.bf16.mxu0 0
      %801 = vmatmul.mubr.bf16.gmra.mrb[0].mxu0 %v682
      %v802 = vpop.f32.mrb[0].mxu0
      %v803 = vadd.f32 %v710, %v802
      %v804 = vpop.f32.mrb[0].mxu0
      %v805 = vpop.f32.mrb[0].mxu0
      %v806 = vadd.f32 %v710, %v805
      %v807 = vpop.f32.mrb[0].mxu0
      %808 = vmatprep.mubr.bf16.mxu0 0
      %809 = vmatmul.mubr.bf16.gmra.mrb[0].mxu0 %v683
      %v810 = vpop.f32.mrb[0].mxu0
      %v811 = vadd.f32 %v710, %v810
      %v812 = vpop.f32.mrb[0].mxu0
      %v813 = vpop.f32.mrb[0].mxu0
      %v814 = vadd.f32 %v710, %v813
      %v815 = vpop.f32.mrb[0].mxu0
      %816 = vmatprep.mubr.bf16.mxu0 0
      %817 = vmatmul.mubr.bf16.gmra.mrb[0].mxu0 %v684
      %v818 = vpop.f32.mrb[0].mxu0
      %v819 = vadd.f32 %v710, %v818
      %v820 = vpop.f32.mrb[0].mxu0
      %v821 = vpop.f32.mrb[0].mxu0
      %v822 = vadd.f32 %v710, %v821
      %v823 = vpop.f32.mrb[0].mxu0
      %824 = vmatprep.mubr.bf16.mxu0 0
      %825 = vmatmul.mubr.bf16.gmra.mrb[0].mxu0 %v685
      %v826 = vpop.f32.mrb[0].mxu0
      %v827 = vadd.f32 %v710, %v826
      %v828 = vpop.f32.mrb[0].mxu0
      %v829 = vpop.f32.mrb[0].mxu0
      %v830 = vadd.f32 %v710, %v829
      %v831 = vpop.f32.mrb[0].mxu0
      %832 = vmatprep.mubr.bf16.mxu0 0
      %833 = vmatmul.mubr.bf16.gmra.mrb[0].mxu0 %v686
      %v834 = vpop.f32.mrb[0].mxu0
      %v835 = vadd.f32 %v710, %v834
      %v836 = vpop.f32.mrb[0].mxu0
      %v837 = vpop.f32.mrb[0].mxu0
      %v838 = vadd.f32 %v710, %v837
      %v839 = vpop.f32.mrb[0].mxu0
      %840 = vmatprep.mubr.bf16.mxu0 0
      %841 = vmatmul.mubr.bf16.gmra.mrb[0].mxu0 %v687
      %v842 = vpop.f32.mrb[0].mxu0
      %v843 = vadd.f32 %v710, %v842
      %v844 = vpop.f32.mrb[0].mxu0
      %v845 = vpop.f32.mrb[0].mxu0
      %v846 = vadd.f32 %v710, %v845
      %v847 = vpop.f32.mrb[0].mxu0
      %848 = vmatprep.mubr.bf16.mxu0 0
      %849 = vmatmul.mubr.bf16.gmra.mrb[0].mxu0 %v688
      %v850 = vpop.f32.mrb[0].mxu0
      %v851 = vadd.f32 %v710, %v850
      %v852 = vpop.f32.mrb[0].mxu0
      %v853 = vpop.f32.mrb[0].mxu0
      %v854 = vadd.f32 %v710, %v853
      %v855 = vpop.f32.mrb[0].mxu0
      %856 = vdwg.mxu0
      %v857 = vmax.f32 %v795, 0.0
      %v858 = vmax.f32 %v798, 0.0
      %v859 = vmax.f32 %v803, 0.0
      %v860 = vmax.f32 %v806, 0.0
      %v861 = vmax.f32 %v811, 0.0
      %v862 = vmax.f32 %v814, 0.0
      %v863 = vmax.f32 %v819, 0.0
      %v864 = vmax.f32 %v822, 0.0
      %v865 = vmax.f32 %v827, 0.0
      %v866 = vmax.f32 %v830, 0.0
      %v867 = vmax.f32 %v835, 0.0
      %v868 = vmax.f32 %v838, 0.0
      %v869 = vmax.f32 %v843, 0.0
      %v870 = vmax.f32 %v846, 0.0
      %v871 = vmax.f32 %v851, 0.0
      %v872 = vmax.f32 %v854, 0.0
      %v873 = vpack.c.bf16 %v858, %v857
      %v874 = vpack.c.bf16 %v860, %v859
      %v875 = vpack.c.bf16 %v862, %v861
      %v876 = vpack.c.bf16 %v864, %v863
      %v877 = vpack.c.bf16 %v866, %v865
      %v878 = vpack.c.bf16 %v868, %v867
      %v879 = vpack.c.bf16 %v870, %v869
      %v880 = vpack.c.bf16 %v872, %v871
      %v881 = vld [vmem:[%s5] sm:$0xf]
      %v882 = vld [vmem:[%s5 + $0x4] sm:$0xf]
      %v883 = vld [vmem:[%s5 + $0x8] sm:$0xf]
      %v884 = vld [vmem:[%s5 + $0xc] sm:$0xf]
      %v885 = vld [vmem:[%s5 + $0x10] sm:$0xf]
      %v886 = vld [vmem:[%s5 + $0x14] sm:$0xf]
      %v887 = vld [vmem:[%s5 + $0x18] sm:$0xf]
      %v888 = vld [vmem:[%s5 + $0x1c] sm:$0xf]
      %v889 = vld [vmem:[%s5 + $0x20] sm:$0xf]
      %v890 = vld [vmem:[%s5 + $0x24] sm:$0xf]
      %v891 = vld [vmem:[%s5 + $0x28] sm:$0xf]
      %v892 = vld [vmem:[%s5 + $0x2c] sm:$0xf]
      %v893 = vld [vmem:[%s5 + $0x30] sm:$0xf]
      %v894 = vld [vmem:[%s5 + $0x34] sm:$0xf]
      %v895 = vld [vmem:[%s5 + $0x38] sm:$0xf]
      %v896 = vld [vmem:[%s5 + $0x3c] sm:$0xf]
      %v897 = vld [vmem:[%s6] sm:$0x1]
      %v899 = vlaneseq
      %v900 = vshrl.u32 %v899, 7
      %v901 = vsub.s32 0, %v900
      %v902 = vrot.slane %v897, %v901
      %v920 = vunpack.c.l.b16 %v881
      %v921 = vunpack.c.l.b16 %v882
      %v922 = vunpack.c.l.b16 %v883
      %v923 = vunpack.c.l.b16 %v884
      %v924 = vunpack.c.l.b16 %v885
      %v925 = vunpack.c.l.b16 %v886
      %v926 = vunpack.c.l.b16 %v887
      %v927 = vunpack.c.l.b16 %v888
      %v928 = vunpack.c.l.b16 %v889
      %v929 = vunpack.c.l.b16 %v890
      %v930 = vunpack.c.l.b16 %v891
      %v931 = vunpack.c.l.b16 %v892
      %v932 = vunpack.c.l.b16 %v893
      %v933 = vunpack.c.l.b16 %v894
      %v934 = vunpack.c.l.b16 %v895
      %v935 = vunpack.c.l.b16 %v896
      %v936 = vpack.c.b16 %v921, %v920
      %v937 = vpack.c.b16 %v923, %v922
      %v938 = vpack.c.b16 %v925, %v924
      %v939 = vpack.c.b16 %v927, %v926
      %v940 = vpack.c.b16 %v929, %v928
      %v941 = vpack.c.b16 %v931, %v930
      %v942 = vpack.c.b16 %v933, %v932
      %v943 = vpack.c.b16 %v935, %v934
      %952 = vmatprep.subr.bf16.mxu0 0
      %953 = vmatpush1.bf16.msra.mxu0 %v936
      %954 = vmatprep.subr.bf16.mxu0 0
      %955 = vmatpush1.bf16.msra.mxu0 %v937
      %956 = vmatprep.subr.bf16.mxu0 0
      %957 = vmatpush1.bf16.msra.mxu0 %v938
      %958 = vmatprep.subr.bf16.mxu0 0
      %959 = vmatpush1.bf16.msra.mxu0 %v939
      %960 = vmatprep.subr.bf16.mxu0 0
      %961 = vmatpush1.bf16.msra.mxu0 %v940
      %962 = vmatprep.subr.bf16.mxu0 0
      %963 = vmatpush1.bf16.msra.mxu0 %v941
      %964 = vmatprep.subr.bf16.mxu0 0
      %965 = vmatpush1.bf16.msra.mxu0 %v942
      %966 = vmatprep.subr.bf16.mxu0 0
      %967 = vmatpush1.bf16.msra.mxu0 %v943
      %968 = vmatprep.subr.bf16.mxu0 0
      %969 = vmatpush1.bf16.msra.mxu0 0
      %970 = vmatprep.subr.bf16.mxu0 0
      %971 = vmatpush1.bf16.msra.mxu0 0
      %972 = vmatprep.subr.bf16.mxu0 0
      %973 = vmatpush1.bf16.msra.mxu0 0
      %974 = vmatprep.subr.bf16.mxu0 0
      %975 = vmatpush1.bf16.msra.mxu0 0
      %976 = vmatprep.subr.bf16.mxu0 0
      %977 = vmatpush1.bf16.msra.mxu0 0
      %978 = vmatprep.subr.bf16.mxu0 0
      %979 = vmatpush1.bf16.msra.mxu0 0
      %980 = vmatprep.subr.bf16.mxu0 0
      %981 = vmatpush1.bf16.msra.mxu0 0
      %982 = vmatprep.subr.bf16.mxu0 0
      %983 = vmatpush1.bf16.msra.mxu0 0
      %984 = vmatprep.mubr.bf16.mxu0 0
      %985 = vmatmul.mubr.bf16.gmra.mrb[0].mxu0 %v873
      %v986 = vpop.f32.mrb[0].mxu0
      %v987 = vadd.f32 %v902, %v986
      %v988 = vpop.f32.mrb[0].mxu0
      %v989 = vpop.f32.mrb[0].mxu0
      %v990 = vadd.f32 %v902, %v989
      %v991 = vpop.f32.mrb[0].mxu0
      %992 = vmatprep.mubr.bf16.mxu0 0
      %993 = vmatmul.mubr.bf16.gmra.mrb[0].mxu0 %v874
      %v994 = vpop.f32.mrb[0].mxu0
      %v995 = vadd.f32 %v902, %v994
      %v996 = vpop.f32.mrb[0].mxu0
      %v997 = vpop.f32.mrb[0].mxu0
      %v998 = vadd.f32 %v902, %v997
      %v999 = vpop.f32.mrb[0].mxu0
      %1000 = vmatprep.mubr.bf16.mxu0 0
      %1001 = vmatmul.mubr.bf16.gmra.mrb[0].mxu0 %v875
      %v1002 = vpop.f32.mrb[0].mxu0
      %v1003 = vadd.f32 %v902, %v1002
      %v1004 = vpop.f32.mrb[0].mxu0
      %v1005 = vpop.f32.mrb[0].mxu0
      %v1006 = vadd.f32 %v902, %v1005
      %v1007 = vpop.f32.mrb[0].mxu0
      %1008 = vmatprep.mubr.bf16.mxu0 0
      %1009 = vmatmul.mubr.bf16.gmra.mrb[0].mxu0 %v876
      %v1010 = vpop.f32.mrb[0].mxu0
      %v1011 = vadd.f32 %v902, %v1010
      %v1012 = vpop.f32.mrb[0].mxu0
      %v1013 = vpop.f32.mrb[0].mxu0
      %v1014 = vadd.f32 %v902, %v1013
      %v1015 = vpop.f32.mrb[0].mxu0
      %1016 = vmatprep.mubr.bf16.mxu0 0
      %1017 = vmatmul.mubr.bf16.gmra.mrb[0].mxu0 %v877
      %v1018 = vpop.f32.mrb[0].mxu0
      %v1019 = vadd.f32 %v902, %v1018
      %v1020 = vpop.f32.mrb[0].mxu0
      %v1021 = vpop.f32.mrb[0].mxu0
      %v1022 = vadd.f32 %v902, %v1021
      %v1023 = vpop.f32.mrb[0].mxu0
      %1024 = vmatprep.mubr.bf16.mxu0 0
      %1025 = vmatmul.mubr.bf16.gmra.mrb[0].mxu0 %v878
      %v1026 = vpop.f32.mrb[0].mxu0
      %v1027 = vadd.f32 %v902, %v1026
      %v1028 = vpop.f32.mrb[0].mxu0
      %v1029 = vpop.f32.mrb[0].mxu0
      %v1030 = vadd.f32 %v902, %v1029
      %v1031 = vpop.f32.mrb[0].mxu0
      %1032 = vmatprep.mubr.bf16.mxu0 0
      %1033 = vmatmul.mubr.bf16.gmra.mrb[0].mxu0 %v879
      %v1034 = vpop.f32.mrb[0].mxu0
      %v1035 = vadd.f32 %v902, %v1034
      %v1036 = vpop.f32.mrb[0].mxu0
      %v1037 = vpop.f32.mrb[0].mxu0
      %v1038 = vadd.f32 %v902, %v1037
      %v1039 = vpop.f32.mrb[0].mxu0
      %1040 = vmatprep.mubr.bf16.mxu0 0
      %1041 = vmatmul.mubr.bf16.gmra.mrb[0].mxu0 %v880
      %v1042 = vpop.f32.mrb[0].mxu0
      %v1043 = vadd.f32 %v902, %v1042
      %v1044 = vpop.f32.mrb[0].mxu0
      %v1045 = vpop.f32.mrb[0].mxu0
      %v1046 = vadd.f32 %v902, %v1045
      %v1047 = vpop.f32.mrb[0].mxu0
      %1048 = vdwg.mxu0
      %v1049 = vmax.f32 %v987, 0.0
      %v1050 = vmax.f32 %v990, 0.0
      %v1051 = vmax.f32 %v995, 0.0
      %v1052 = vmax.f32 %v998, 0.0
      %v1053 = vmax.f32 %v1003, 0.0
      %v1054 = vmax.f32 %v1006, 0.0
      %v1055 = vmax.f32 %v1011, 0.0
      %v1056 = vmax.f32 %v1014, 0.0
      %v1057 = vmax.f32 %v1019, 0.0
      %v1058 = vmax.f32 %v1022, 0.0
      %v1059 = vmax.f32 %v1027, 0.0
      %v1060 = vmax.f32 %v1030, 0.0
      %v1061 = vmax.f32 %v1035, 0.0
      %v1062 = vmax.f32 %v1038, 0.0
      %v1063 = vmax.f32 %v1043, 0.0
      %v1064 = vmax.f32 %v1046, 0.0
      %v1065 = vpack.c.bf16 %v1050, %v1049
      %v1066 = vpack.c.bf16 %v1052, %v1051
      %v1067 = vpack.c.bf16 %v1054, %v1053
      %v1068 = vpack.c.bf16 %v1056, %v1055
      %v1069 = vpack.c.bf16 %v1058, %v1057
      %v1070 = vpack.c.bf16 %v1060, %v1059
      %v1071 = vpack.c.bf16 %v1062, %v1061
      %v1072 = vpack.c.bf16 %v1064, %v1063
      %v1073 = vld [vmem:[%s7] sm:$0xf]
      %v1074 = vld [vmem:[%s7 + $0x4] sm:$0xf]
      %v1075 = vld [vmem:[%s7 + $0x8] sm:$0xf]
      %v1076 = vld [vmem:[%s7 + $0xc] sm:$0xf]
      %v1077 = vld [vmem:[%s7 + $0x10] sm:$0xf]
      %v1078 = vld [vmem:[%s7 + $0x14] sm:$0xf]
      %v1079 = vld [vmem:[%s7 + $0x18] sm:$0xf]
      %v1080 = vld [vmem:[%s7 + $0x1c] sm:$0xf]
      %v1081 = vld [vmem:[%s7 + $0x20] sm:$0xf]
      %v1082 = vld [vmem:[%s7 + $0x24] sm:$0xf]
      %v1083 = vld [vmem:[%s7 + $0x28] sm:$0xf]
      %v1084 = vld [vmem:[%s7 + $0x2c] sm:$0xf]
      %v1085 = vld [vmem:[%s7 + $0x30] sm:$0xf]
      %v1086 = vld [vmem:[%s7 + $0x34] sm:$0xf]
      %v1087 = vld [vmem:[%s7 + $0x38] sm:$0xf]
      %v1088 = vld [vmem:[%s7 + $0x3c] sm:$0xf]
      %v1089 = vld [vmem:[%s8] sm:$0x1]
      %v1091 = vlaneseq
      %v1092 = vshrl.u32 %v1091, 7
      %v1093 = vsub.s32 0, %v1092
      %v1094 = vrot.slane %v1089, %v1093
      %v1112 = vunpack.c.l.b16 %v1073
      %v1113 = vunpack.c.l.b16 %v1074
      %v1114 = vunpack.c.l.b16 %v1075
      %v1115 = vunpack.c.l.b16 %v1076
      %v1116 = vunpack.c.l.b16 %v1077
      %v1117 = vunpack.c.l.b16 %v1078
      %v1118 = vunpack.c.l.b16 %v1079
      %v1119 = vunpack.c.l.b16 %v1080
      %v1120 = vunpack.c.l.b16 %v1081
      %v1121 = vunpack.c.l.b16 %v1082
      %v1122 = vunpack.c.l.b16 %v1083
      %v1123 = vunpack.c.l.b16 %v1084
      %v1124 = vunpack.c.l.b16 %v1085
      %v1125 = vunpack.c.l.b16 %v1086
      %v1126 = vunpack.c.l.b16 %v1087
      %v1127 = vunpack.c.l.b16 %v1088
      %v1128 = vpack.c.b16 %v1113, %v1112
      %v1129 = vpack.c.b16 %v1115, %v1114
      %v1130 = vpack.c.b16 %v1117, %v1116
      %v1131 = vpack.c.b16 %v1119, %v1118
      %v1132 = vpack.c.b16 %v1121, %v1120
      %v1133 = vpack.c.b16 %v1123, %v1122
      %v1134 = vpack.c.b16 %v1125, %v1124
      %v1135 = vpack.c.b16 %v1127, %v1126
      %1144 = vmatprep.subr.bf16.mxu0 0
      %1145 = vmatpush1.bf16.msra.mxu0 %v1128
      %1146 = vmatprep.subr.bf16.mxu0 0
      %1147 = vmatpush1.bf16.msra.mxu0 %v1129
      %1148 = vmatprep.subr.bf16.mxu0 0
      %1149 = vmatpush1.bf16.msra.mxu0 %v1130
      %1150 = vmatprep.subr.bf16.mxu0 0
      %1151 = vmatpush1.bf16.msra.mxu0 %v1131
      %1152 = vmatprep.subr.bf16.mxu0 0
      %1153 = vmatpush1.bf16.msra.mxu0 %v1132
      %1154 = vmatprep.subr.bf16.mxu0 0
      %1155 = vmatpush1.bf16.msra.mxu0 %v1133
      %1156 = vmatprep.subr.bf16.mxu0 0
      %1157 = vmatpush1.bf16.msra.mxu0 %v1134
      %1158 = vmatprep.subr.bf16.mxu0 0
      %1159 = vmatpush1.bf16.msra.mxu0 %v1135
      %1160 = vmatprep.subr.bf16.mxu0 0
      %1161 = vmatpush1.bf16.msra.mxu0 0
      %1162 = vmatprep.subr.bf16.mxu0 0
      %1163 = vmatpush1.bf16.msra.mxu0 0
      %1164 = vmatprep.subr.bf16.mxu0 0
      %1165 = vmatpush1.bf16.msra.mxu0 0
      %1166 = vmatprep.subr.bf16.mxu0 0
      %1167 = vmatpush1.bf16.msra.mxu0 0
      %1168 = vmatprep.subr.bf16.mxu0 0
      %1169 = vmatpush1.bf16.msra.mxu0 0
      %1170 = vmatprep.subr.bf16.mxu0 0
      %1171 = vmatpush1.bf16.msra.mxu0 0
      %1172 = vmatprep.subr.bf16.mxu0 0
      %1173 = vmatpush1.bf16.msra.mxu0 0
      %1174 = vmatprep.subr.bf16.mxu0 0
      %1175 = vmatpush1.bf16.msra.mxu0 0
      %1176 = vmatprep.mubr.bf16.mxu0 0
      %1177 = vmatmul.mubr.bf16.gmra.mrb[0].mxu0 %v1065
      %v1178 = vpop.f32.mrb[0].mxu0
      %v1179 = vadd.f32 %v1094, %v1178
      %v1180 = vpop.f32.mrb[0].mxu0
      %v1181 = vpop.f32.mrb[0].mxu0
      %v1182 = vadd.f32 %v1094, %v1181
      %v1183 = vpop.f32.mrb[0].mxu0
      %1184 = vmatprep.mubr.bf16.mxu0 0
      %1185 = vmatmul.mubr.bf16.gmra.mrb[0].mxu0 %v1066
      %v1186 = vpop.f32.mrb[0].mxu0
      %v1187 = vadd.f32 %v1094, %v1186
      %v1188 = vpop.f32.mrb[0].mxu0
      %v1189 = vpop.f32.mrb[0].mxu0
      %v1190 = vadd.f32 %v1094, %v1189
      %v1191 = vpop.f32.mrb[0].mxu0
      %1192 = vmatprep.mubr.bf16.mxu0 0
      %1193 = vmatmul.mubr.bf16.gmra.mrb[0].mxu0 %v1067
      %v1194 = vpop.f32.mrb[0].mxu0
      %v1195 = vadd.f32 %v1094, %v1194
      %v1196 = vpop.f32.mrb[0].mxu0
      %v1197 = vpop.f32.mrb[0].mxu0
      %v1198 = vadd.f32 %v1094, %v1197
      %v1199 = vpop.f32.mrb[0].mxu0
      %1200 = vmatprep.mubr.bf16.mxu0 0
      %1201 = vmatmul.mubr.bf16.gmra.mrb[0].mxu0 %v1068
      %v1202 = vpop.f32.mrb[0].mxu0
      %v1203 = vadd.f32 %v1094, %v1202
      %v1204 = vpop.f32.mrb[0].mxu0
      %v1205 = vpop.f32.mrb[0].mxu0
      %v1206 = vadd.f32 %v1094, %v1205
      %v1207 = vpop.f32.mrb[0].mxu0
      %1208 = vmatprep.mubr.bf16.mxu0 0
      %1209 = vmatmul.mubr.bf16.gmra.mrb[0].mxu0 %v1069
      %v1210 = vpop.f32.mrb[0].mxu0
      %v1211 = vadd.f32 %v1094, %v1210
      %v1212 = vpop.f32.mrb[0].mxu0
      %v1213 = vpop.f32.mrb[0].mxu0
      %v1214 = vadd.f32 %v1094, %v1213
      %v1215 = vpop.f32.mrb[0].mxu0
      %1216 = vmatprep.mubr.bf16.mxu0 0
      %1217 = vmatmul.mubr.bf16.gmra.mrb[0].mxu0 %v1070
      %v1218 = vpop.f32.mrb[0].mxu0
      %v1219 = vadd.f32 %v1094, %v1218
      %v1220 = vpop.f32.mrb[0].mxu0
      %v1221 = vpop.f32.mrb[0].mxu0
      %v1222 = vadd.f32 %v1094, %v1221
      %v1223 = vpop.f32.mrb[0].mxu0
      %1224 = vmatprep.mubr.bf16.mxu0 0
      %1225 = vmatmul.mubr.bf16.gmra.mrb[0].mxu0 %v1071
      %v1226 = vpop.f32.mrb[0].mxu0
      %v1227 = vadd.f32 %v1094, %v1226
      %v1228 = vpop.f32.mrb[0].mxu0
      %v1229 = vpop.f32.mrb[0].mxu0
      %v1230 = vadd.f32 %v1094, %v1229
      %v1231 = vpop.f32.mrb[0].mxu0
      %1232 = vmatprep.mubr.bf16.mxu0 0
      %1233 = vmatmul.mubr.bf16.gmra.mrb[0].mxu0 %v1072
      %v1234 = vpop.f32.mrb[0].mxu0
      %v1235 = vadd.f32 %v1094, %v1234
      %v1236 = vpop.f32.mrb[0].mxu0
      %v1237 = vpop.f32.mrb[0].mxu0
      %v1238 = vadd.f32 %v1094, %v1237
      %v1239 = vpop.f32.mrb[0].mxu0
      %1240 = vdwg.mxu0
      %1241 = vxpose.xlu0.b32.start [1/16] %v1179, 128
      %1242 = vxpose.xlu0.b32.cont [2/16] %v1182, 128
      %1243 = vxpose.xlu0.b32.cont [3/16] %v1187, 128
      %1244 = vxpose.xlu0.b32.cont [4/16] %v1190, 128
      %1245 = vxpose.xlu0.b32.cont [5/16] %v1195, 128
      %1246 = vxpose.xlu0.b32.cont [6/16] %v1198, 128
      %1247 = vxpose.xlu0.b32.cont [7/16] %v1203, 128
      %1248 = vxpose.xlu0.b32.cont [8/16] %v1206, 128
      %1249 = vxpose.xlu0.b32.cont [9/16] %v1211, 128
      %1250 = vxpose.xlu0.b32.cont [10/16] %v1214, 128
      %1251 = vxpose.xlu0.b32.cont [11/16] %v1219, 128
      %1252 = vxpose.xlu0.b32.cont [12/16] %v1222, 128
      %1253 = vxpose.xlu0.b32.cont [13/16] %v1227, 128
      %1254 = vxpose.xlu0.b32.cont [14/16] %v1230, 128
      %1255 = vxpose.xlu0.b32.cont [15/16] %v1235, 128
      %1256 = vxpose.xlu0.b32.end [16/16] %v1238, 128
      %v1257 = vpop.trf.xlu0
      %v1258 = vpop.trf.xlu0
      %v1259 = vpop.trf.xlu0
      %v1260 = vpop.trf.xlu0
      %v1261 = vpop.trf.xlu0
      %v1262 = vpop.trf.xlu0
      %v1263 = vpop.trf.xlu0
      %v1264 = vpop.trf.xlu0
      %v1265 = vpop.trf.xlu0
      %v1266 = vpop.trf.xlu0
      %v1267 = vpop.trf.xlu0
      %v1268 = vpop.trf.xlu0
      %v1269 = vpop.trf.xlu0
      %v1270 = vpop.trf.xlu0
      %v1271 = vpop.trf.xlu0
      %v1272 = vpop.trf.xlu0
      %v1273 = vrot.slane %v1257, 4
      %v1274 = vmax.f32 %v1257, %v1273
      %v1275 = vrot.slane %v1274, 2
      %v1276 = vmax.f32 %v1274, %v1275
      %v1277 = vrot.slane %v1276, 1
      %v1278 = vmax.f32 %v1276, %v1277
      %v1279 = vsub.f32 %v1257, %v1278
      %v1280 = vmul.f32 %v1279, 1.442695
      %v1281 = vpow.pop %v1280
      %v1282 = vrot.slane %v1281, 4
      %v1283 = vadd.f32 %v1281, %v1282
      %v1284 = vrot.slane %v1283, 2
      %v1285 = vadd.f32 %v1283, %v1284
      %v1286 = vrot.slane %v1285, 1
      %v1287 = vadd.f32 %v1285, %v1286
      %v1288 = vlog2.pop %v1287
      %v1289 = vmul.f32 %v1288, 0.6931472
      %v1290 = vsub.f32 %v1279, %v1289
      %1291 = vst [vmem:[%s335] sm:$0xff] %v1290
      %p1292 = scmp.lt.s32.totalorder %s20, 1
      %s1293 = scalar_select %p1292, %s20, 1
      %s1294 = smul.addr %s1293, 8
      %s1295 = scalar_lea.vmem %s9, %s1294
      // Predicated region
      $region57: #{smart_mattress_forward.1} parent=55 // pred_check
        %p1296 = pneg %p232
      $region58: #{smart_mattress_forward.1} parent=55 // pred_check_branch
        %1298 = sbr.rel (%p1296) target = $region60
      $region59: #{smart_mattress_forward.1} parent=55 // pred_region
        _
      $region60: #{smart_mattress_forward.1} parent=55 // pred_fallthru
        _
    $region56: #{smart_mattress_forward.1} parent=5 // pred_fallthru
      _
    %p1299 = scmp.le.s32.totalorder 2, %s15
    // Predicated region
    $region61: #{smart_mattress_forward.1} parent=5 // pred_check
      %p1300 = pneg %p1299
    $region62: #{smart_mattress_forward.1} parent=5 // pred_check_branch
      %1302 = sbr.rel (%p1300) target = $region64
    $region63: #{smart_mattress_forward.1} parent=5 // pred_region
      %s1303 = ssub.s32 %s15, 2
      // Predicated region
      $region65: #{smart_mattress_forward.1} parent=63 // pred_check
        %p1304 = pneg %p238
      $region66: #{smart_mattress_forward.1} parent=63 // pred_check_branch
        %1306 = sbr.rel (%p1304) target = $region68
      $region67: #{smart_mattress_forward.1} parent=63 // pred_region
        %p1307 = scmp.lt.s32.totalorder %s21, 1
        %s1308 = scalar_select %p1307, %s21, 1
        %s1309 = smul.addr %s1308, 8
        %s1310 = scalar_lea.vmem %s9, %s1309
      $region68: #{smart_mattress_forward.1} parent=63 // pred_fallthru
        _
    $region64: #{smart_mattress_forward.1} parent=5 // pred_fallthru
      _
  $region6: #{smart_mattress_forward.1} parent=0 // loop_footer
    %s19 = sadd.s32 1, %s15
  $region7: #{smart_mattress_forward.1} parent=0 // loop_footer_branch
    %14 = sbr.rel target = $region3
  $region8: #{smart_mattress_forward.1} parent=0 // loop_exit
    _

</llo_original>
